<compile_context>
chip_gen: v7x
topology: tpu7x:2x2x1
jax: 0.10.0
libtpu: 0.0.40
codegen_flags: <defaults>
</compile_context>

<pallas_src>
import jax
import jax.numpy as jnp
from jax.experimental import pallas as pl
from jax.experimental.pallas import tpu as pltpu

_LANE = 128


def anyhead_kernel(x_ref, w_ref, b_ref, o_ref):
    # x_ref: (TN, C, HW)  native dtype straight from HBM (no pre-upcast in HBM)
    # w_ref: (C, NCP)     pre-transposed weight with 1/HW folded in (f32)
    # b_ref: (1, NCP)     bias, zero-padded to lane-dense NCP (f32)
    # o_ref: (TN, NCP)
    # Spatial sum accumulated in f32 (mean's 1/HW already lives in w_ref).
    pooled = jnp.sum(x_ref[...], axis=-1, dtype=jnp.float32)        # (TN, C)
    out = jnp.dot(pooled, w_ref[...],
                  preferred_element_type=jnp.float32)                # (TN, NCP) -> MXU
    o_ref[...] = (out + b_ref[...]).astype(o_ref.dtype)


def _vmem_limit_bytes():
    # v5e/v6e: 128 MiB physical; v7x: 64 MiB.  Use ~3/4 of physical, capped at
    # 96 MiB, with a v7x-safe fallback if the query is unavailable.
    try:
        cap = int(pltpu.get_tpu_info().vmem_capacity_bytes)
    except Exception:
        cap = 64 * 1024 * 1024
    return int(min(cap * 3 // 4, 96 * 1024 * 1024))


def any_head_forward(x_nchw, weight, bias, *, tile_n=None):
    """x_nchw: (N, C, H, W); weight: (nc, C) [PyTorch Linear layout]; bias: (nc,)."""
    N, C, H, W = x_nchw.shape
    nc = weight.shape[0]
    HW = H * W

    # NCHW -> (N, C, HW): contiguous reshape, no transpose (no extra HBM pass).
    x = x_nchw.reshape(N, C, HW)

    # Pre-transpose weight to (C, nc) and fold the pooling 1/HW into it.
    w_t = jnp.transpose(weight, (1, 0)).astype(jnp.float32) * (1.0 / HW)
    b = bias.astype(jnp.float32)

    # Lane-dense class dim: pad nc up to a multiple of 128.
    ncp = max(_LANE, ((nc + _LANE - 1) // _LANE) * _LANE)
    if ncp != nc:
        w_t = jnp.pad(w_t, ((0, 0), (0, ncp - nc)))
        b = jnp.pad(b, (0, ncp - nc))
    b2d = b.reshape(1, ncp)

    vmem_limit = _vmem_limit_bytes()

    # Batch tile: biggest multiple of 8 whose double-buffered input tile stays
    # comfortably inside the scoped VMEM limit (room left for w/b/out buffers).
    if tile_n is None:
        row_bytes = C * HW * x.dtype.itemsize
        per_buf_budget = max(vmem_limit // 4, 1 << 20)
        tn = max(8, (per_buf_budget // max(row_bytes, 1)) // 8 * 8)
    else:
        tn = int(tile_n)
    tn = max(1, min(tn, N))
    # Output block's sublane dim must be a multiple of 8 or the full batch.
    if tn != N and tn % 8 != 0:
        tn = min(N, ((tn + 7) // 8) * 8)

    grid = (pl.cdiv(N, tn),)

    # TODO(synk): for very large H*W, add a second "arbitrary" grid axis over
    # HW with an f32 VMEM scratch accumulator (pl.when init/finalize) so the
    # per-step tile is (TN, C, THW) instead of the whole spatial slab.
    out = pl.pallas_call(
        anyhead_kernel,
        out_shape=jax.ShapeDtypeStruct((N, ncp), x_nchw.dtype),
        grid_spec=pltpu.PrefetchScalarGridSpec(
            num_scalar_prefetch=0,
            grid=grid,
            in_specs=[
                pl.BlockSpec((tn, C, HW), lambda i: (i, 0, 0)),  # streamed over batch
                pl.BlockSpec((C, ncp), lambda i: (0, 0)),        # resident weight
                pl.BlockSpec((1, ncp), lambda i: (0, 0)),        # resident bias
            ],
            out_specs=pl.BlockSpec((tn, ncp), lambda i: (i, 0)),
        ),
        compiler_params=pltpu.CompilerParams(
            dimension_semantics=("parallel",),  # shard batch tiles across TCs (v7x)
            vmem_limit_bytes=vmem_limit,
        ),
    )(x, w_t, b2d)

    return out[:, :nc]


def reference(x_nchw, weight, bias):
    pooled = jnp.mean(x_nchw.astype(jnp.float32), axis=(2, 3))
    return pooled @ weight.astype(jnp.float32).T + bias.astype(jnp.float32)[None, :]


if __name__ == "__main__":
    key = jax.random.PRNGKey(0)
    N, C, H, W = 16, 32, 8, 8      # w_in = 32
    nc = 16

    kx, kw, kb = jax.random.split(key, 3)
    x = jax.random.normal(kx, (N, C, H, W), dtype=jnp.float32)
    # Deterministic "Linear" params (synthetic, PyTorch-like uniform range).
    bound = 1.0 / (C ** 0.5)
    weight = jax.random.uniform(kw, (nc, C), minval=-bound, maxval=bound,
                                dtype=jnp.float32)
    bias = jax.random.uniform(kb, (nc,), minval=-bound, maxval=bound,
                              dtype=jnp.float32)

    # tile_n=8 -> grid=(2,) so the batch-tiled pipeline is actually exercised.
    out = any_head_forward(x, weight, bias, tile_n=8)
    out = jax.block_until_ready(out)

    ref = reference(x, weight, bias)
    assert out.shape == (N, nc), out.shape
    assert jnp.allclose(out.astype(jnp.float32), ref, atol=1e-5, rtol=1e-5), \
        "mismatch vs reference"
    print("KERNEL_OK")
</pallas_src>

<mosaic_0001>
module attributes {stable_mosaic.version = 11 : i64} {
  func.func @anyhead_kernel(%arg0: i32, %arg1: memref<8x32x64xf32, #tpu.memory_space<vmem>>, %arg2: memref<32x128xf32, #tpu.memory_space<vmem>>, %arg3: memref<1x128xf32, #tpu.memory_space<vmem>>, %arg4: memref<8x128xf32, #tpu.memory_space<vmem>>) attributes {dimension_semantics = [#tpu.dimension_semantics<parallel>], iteration_bounds = array<i64: 2>, scalar_prefetch = 0 : i64, scratch_operands = 0 : i64, tpu.core_type = #tpu.core_type<tc>, window_params = [{transform_indices = @transform_0, window_bounds = array<i64: 8, 32, 64>}, {pipeline_mode = #tpu.pipeline_mode<synchronous>, transform_indices = @transform_1, window_bounds = array<i64: 32, 128>}, {pipeline_mode = #tpu.pipeline_mode<synchronous>, transform_indices = @transform_2, window_bounds = array<i64: 1, 128>}, {transform_indices = @transform_3, window_bounds = array<i64: 8, 128>}]} {
    %c0 = arith.constant 0 : index
    %c0_0 = arith.constant 0 : index
    %c0_1 = arith.constant 0 : index
    %0 = vector.load %arg1[%c0, %c0_0, %c0_1] : memref<8x32x64xf32, #tpu.memory_space<vmem>>, vector<8x32x64xf32>
    %cst = arith.constant dense<0.000000e+00> : vector<8x32xf32>
    %1 = vector.multi_reduction <add>, %0, %cst [2] : vector<8x32x64xf32> to vector<8x32xf32>
    %c0_2 = arith.constant 0 : index
    %c0_3 = arith.constant 0 : index
    %2 = vector.load %arg2[%c0_2, %c0_3] : memref<32x128xf32, #tpu.memory_space<vmem>>, vector<32x128xf32>
    %cst_4 = arith.constant dense<0.000000e+00> : vector<8x128xf32>
    %3 = tpu.matmul %1, %2, %cst_4 {dimension_numbers = #tpu.dot_dimension_numbers<[1], [0], [0], [1], [0, 0, 1, 1], [], []>} : vector<8x32xf32>, vector<32x128xf32>, vector<8x128xf32> -> vector<8x128xf32>
    %c0_5 = arith.constant 0 : index
    %c0_6 = arith.constant 0 : index
    %4 = vector.load %arg3[%c0_5, %c0_6] : memref<1x128xf32, #tpu.memory_space<vmem>>, vector<1x128xf32>
    %5 = vector.broadcast %4 : vector<1x128xf32> to vector<8x128xf32>
    %6 = arith.addf %3, %5 : vector<8x128xf32>
    %c0_7 = arith.constant 0 : index
    %c0_8 = arith.constant 0 : index
    %7 = vector.load %arg4[%c0_7, %c0_8] : memref<8x128xf32, #tpu.memory_space<vmem>>, vector<8x128xf32>
    tpu.vector_store %arg4[%c0_7, %c0_8], %6 {strides = array<i32>} : memref<8x128xf32, #tpu.memory_space<vmem>>, vector<8x128xf32>,
    return
  }
  func.func @transform_0(%arg0: i32) -> (i32, i32, i32) {
    %c0_i32 = arith.constant 0 : i32
    %c0_i32_0 = arith.constant 0 : i32
    %c0_i32_1 = arith.constant 0 : i32
    return %arg0, %c0_i32, %c0_i32_0 : i32, i32, i32
  }
  func.func @transform_1(%arg0: i32) -> (i32, i32) {
    %c0_i32 = arith.constant 0 : i32
    %c0_i32_0 = arith.constant 0 : i32
    %c0_i32_1 = arith.constant 0 : i32
    return %c0_i32, %c0_i32_0 : i32, i32
  }
  func.func @transform_2(%arg0: i32) -> (i32, i32) {
    %c0_i32 = arith.constant 0 : i32
    %c0_i32_0 = arith.constant 0 : i32
    %c0_i32_1 = arith.constant 0 : i32
    return %c0_i32, %c0_i32_0 : i32, i32
  }
  func.func @transform_3(%arg0: i32) -> (i32, i32) {
    %c0_i32 = arith.constant 0 : i32
    %c0_i32_0 = arith.constant 0 : i32
    return %arg0, %c0_i32 : i32, i32
  }
}

</mosaic_0001>

<llo_original>
// kernel: tpu_custom_call.1
$region0: #{tpu_custom_call.1}
  #allocation0 [shape = 'u32[]', space=smem, size = 0x4, offset = 0x4, fixed_abs, tag = 'smem constant byte address 0x4 - core index']
  #allocation1 [shape = 'u32[144,128]{1,0:T(1,128)}', space=vmem, size = 0x12000, scoped, tag = 'internal scratch']
  %s0 = inlined_call_operand.hbm [shape: f32[16,32,64], index: 0, kind: input, shape index: {}]
  %s1 = inlined_call_operand.hbm [shape: f32[32,128], index: 1, kind: input, shape index: {}]
  %s2 = inlined_call_operand.vmem [shape: f32[1,128], index: 2, kind: input, shape index: {}]
  %s3 = inlined_call_operand.hbm [shape: f32[16,128], index: 3, kind: output, shape index: {}]
  %s4 = sld [smem:[#allocation0]]
  $region53: #{tpu_custom_call.1} parent=0
    _
  %s6 = ssub.s32 1, %s4
  %s7 = scalar_select 0, %s6, %s4
  $region1: #{tpu_custom_call.1} parent=0
    #allocation2 [shape = 'u8[262144]{0}', space=vmem, size = 0x40000, scoped, tag = 'input window, operand 0']
    #allocation3 [shape = 's32[2]{0}', space=sflag, size = 0x8, scoped, tag = 'scoped memory for tpu_custom_call.1']
    #allocation4 [shape = 's32[2]{0}', space=sflag, size = 0x8, scoped, tag = 'scoped memory for tpu_custom_call.1']
    #allocation5 [shape = 'u8[16384]{0}', space=vmem, size = 0x4000, scoped, tag = 'input window, operand 1, single buffered']
    #allocation6 [shape = 's32[1]{0}', space=sflag, size = 0x4, scoped, tag = 'scoped memory for tpu_custom_call.1']
    #allocation7 [shape = 'u8[8192]{0}', space=vmem, size = 0x2000, scoped, tag = 'output window, operand 0']
    %8 = vsyncpa [#allocation3], 0
    %s9 = scalar_lea.sflag [#allocation3], 1
    %10 = vsyncpa %s9, 0
    %11 = vsyncpa [#allocation6], 0
    %12 = vsyncpa [#allocation4], 0
    %s13 = scalar_lea.sflag [#allocation4], 1
    %14 = vsyncpa %s13, 0
    loop: start=0, step=1, limit=4
    $region2: #{tpu_custom_call.1} parent=1 // loop_pre_header
      _
    $region3: #{tpu_custom_call.1} parent=1 // loop_header
      %s16 = sphi 0, %s20
      %p17 = scmp.ge.s32.totalorder %s16, 4
      %s26 = sphi 0, %s28
      %s29 = sphi 0, %s26
      %s30 = sphi 0, %s29
      %s46 = sphi 0, %s30
      %s50 = sphi 0, %s50
      %s52 = sphi 0, %s50
      %s53 = sphi 0, %s52
      %s67 = sphi 0, %s53
      %s71 = sphi 0, %s71
      %s73 = sphi 0, %s71
      %s74 = sphi 0, %s73
      %s88 = sphi 0, %s74
      %s94 = sphi 0, %s96
      %s97 = sphi 0, %s94
      %s98 = sphi 0, %s97
      %s114 = sphi 0, %s98
    $region4: #{tpu_custom_call.1} parent=1 // loop_header_branch
      %19 = sbr.rel (%p17) target = $region8
    $region5: #{tpu_custom_call.1} parent=1 // loop_body
      %s21 = ssub.s32 %s16, 1
      %s22 = ssub.s32 %s16, 2
      %s23 = sadd.s32 %s16, 1
      %s24 = ssub.s32 %s16, %s23
      %p25 = scmp.eq.s32.totalorder %s24, 0
      %s27 = sadd.s32 %s26, 1
      %s28 = scalar_select %p25, %s26, %s27
      %p31 = pneg %p25
      %p32 = scmp.eq.s32.totalorder %s16, 1
      %p33 = por %p31, %p32
      %p34 = scmp.ne.s32.totalorder %s26, %s29
      %p35 = scmp.eq.s32.totalorder %s16, 0
      %p36 = por %p34, %p35
      %p37 = scmp.ne.s32.totalorder %s26, %s29
      %p38 = scmp.eq.s32.totalorder %s21, 1
      %p39 = por %p37, %p38
      %p40 = scmp.ne.s32.totalorder %s29, %s30
      %p41 = scmp.eq.s32.totalorder %s21, 0
      %p42 = por %p40, %p41
      %p43 = scmp.ne.s32.totalorder %s29, %s30
      %p44 = scmp.eq.s32.totalorder %s22, 1
      %p45 = por %p43, %p44
      %p47 = scmp.ne.s32.totalorder %s30, %s46
      %p48 = scmp.eq.s32.totalorder %s22, 0
      %p49 = por %p47, %p48
      %s51 = sadd.s32 %s50, 1
      %p54 = scmp.eq.s32.totalorder %s16, 1
      %p55 = scmp.ne.s32.totalorder %s50, %s52
      %p56 = scmp.eq.s32.totalorder %s16, 0
      %p57 = por %p55, %p56
      %p58 = scmp.ne.s32.totalorder %s50, %s52
      %p59 = scmp.eq.s32.totalorder %s21, 1
      %p60 = por %p58, %p59
      %p61 = scmp.ne.s32.totalorder %s52, %s53
      %p62 = scmp.eq.s32.totalorder %s21, 0
      %p63 = por %p61, %p62
      %p64 = scmp.ne.s32.totalorder %s52, %s53
      %p65 = scmp.eq.s32.totalorder %s22, 1
      %p66 = por %p64, %p65
      %p68 = scmp.ne.s32.totalorder %s53, %s67
      %p69 = scmp.eq.s32.totalorder %s22, 0
      %p70 = por %p68, %p69
      %s72 = sadd.s32 %s71, 1
      %p75 = scmp.eq.s32.totalorder %s16, 1
      %p76 = scmp.ne.s32.totalorder %s71, %s73
      %p77 = scmp.eq.s32.totalorder %s16, 0
      %p78 = por %p76, %p77
      %p79 = scmp.ne.s32.totalorder %s71, %s73
      %p80 = scmp.eq.s32.totalorder %s21, 1
      %p81 = por %p79, %p80
      %p82 = scmp.ne.s32.totalorder %s73, %s74
      %p83 = scmp.eq.s32.totalorder %s21, 0
      %p84 = por %p82, %p83
      %p85 = scmp.ne.s32.totalorder %s73, %s74
      %p86 = scmp.eq.s32.totalorder %s22, 1
      %p87 = por %p85, %p86
      %p89 = scmp.ne.s32.totalorder %s74, %s88
      %p90 = scmp.eq.s32.totalorder %s22, 0
      %p91 = por %p89, %p90
      %s92 = ssub.s32 %s16, %s23
      %p93 = scmp.eq.s32.totalorder %s92, 0
      %s95 = sadd.s32 %s94, 1
      %s96 = scalar_select %p93, %s94, %s95
      %p99 = pneg %p93
      %p100 = scmp.eq.s32.totalorder %s16, 1
      %p101 = por %p99, %p100
      %p102 = scmp.ne.s32.totalorder %s94, %s97
      %p103 = scmp.eq.s32.totalorder %s16, 0
      %p104 = por %p102, %p103
      %p105 = scmp.ne.s32.totalorder %s94, %s97
      %p106 = scmp.eq.s32.totalorder %s21, 1
      %p107 = por %p105, %p106
      %p108 = scmp.ne.s32.totalorder %s97, %s98
      %p109 = scmp.eq.s32.totalorder %s21, 0
      %p110 = por %p108, %p109
      %p111 = scmp.ne.s32.totalorder %s97, %s98
      %p112 = scmp.eq.s32.totalorder %s22, 1
      %p113 = por %p111, %p112
      %p115 = scmp.ne.s32.totalorder %s98, %s114
      %p116 = scmp.eq.s32.totalorder %s22, 0
      %p117 = por %p115, %p116
      %p118 = scmp.le.s32.totalorder 1, %s16
      %p119 = scmp.lt.s32.totalorder %s16, 3
      %p120 = pnand %p118, %p119
      %p121 = pneg %p120
      // Predicated region
      $region9: #{tpu_custom_call.1} parent=5 // pred_check
        _
      $region10: #{tpu_custom_call.1} parent=5 // pred_check_branch
        %123 = sbr.rel (%p120) target = $region12
      $region11: #{tpu_custom_call.1} parent=5 // pred_region
        %s124 = ssub.s32 %s16, 1
        // Predicated region
        $region13: #{tpu_custom_call.1} parent=11 // pred_check
          %p125 = pneg %p63
        $region14: #{tpu_custom_call.1} parent=11 // pred_check_branch
          %127 = sbr.rel (%p125) target = $region16
        $region15: #{tpu_custom_call.1} parent=11 // pred_region
          %s129 = ssub.s32 512, 512
          %130 = vsyncadd [#allocation6], %s129
          %s131 = sshll.u32 [#allocation5], 4
          %s132 = int_to_ptr.vmem [resolvable:$true] %s131
          %137 = dma.hbm_to_vmem [thread:$0]  %s1, 512, %s132, [#allocation6], 128, 128, 8
        $region16: #{tpu_custom_call.1} parent=11 // pred_fallthru
          _
        // Predicated region
        $region17: #{tpu_custom_call.1} parent=11 // pred_check
          %p138 = pneg %p84
        $region18: #{tpu_custom_call.1} parent=11 // pred_check_branch
          %140 = sbr.rel (%p138) target = $region20
        $region19: #{tpu_custom_call.1} parent=11 // pred_region
          _
        $region20: #{tpu_custom_call.1} parent=11 // pred_fallthru
          _
      $region12: #{tpu_custom_call.1} parent=5 // pred_fallthru
        _
      %p141 = scmp.lt.s32.totalorder %s16, 2
      // Predicated region
      $region21: #{tpu_custom_call.1} parent=5 // pred_check
        %p142 = pneg %p141
      $region22: #{tpu_custom_call.1} parent=5 // pred_check_branch
        %144 = sbr.rel (%p142) target = $region24
      $region23: #{tpu_custom_call.1} parent=5 // pred_region
        // Predicated region
        $region25: #{tpu_custom_call.1} parent=23 // pred_check
          %p145 = pneg %p36
        $region26: #{tpu_custom_call.1} parent=23 // pred_check_branch
          %147 = sbr.rel (%p145) target = $region28
        $region27: #{tpu_custom_call.1} parent=23 // pred_region
          %s148 = sand.u32 %s26, 1
          %s149 = scalar_lea.sflag [#allocation3], %s148
          %s150 = sand.u32 %s26, 1
          %s151 = smul.addr %s150, 256
          %s152 = scalar_lea.vmem [#allocation2], %s151
          %s153 = smul.u32 8, %s16
          %s155 = ssub.s32 4096, 4096
          %156 = vsyncadd %s149, %s155
          %s157 = smul.addr %s153, 4
          %s158 = smul.addr %s157, 128
          %s159 = scalar_lea.hbm %s0, %s158
          %s160 = sshll.u32 %s152, 4
          %s161 = int_to_ptr.vmem [resolvable:$true] %s160
          %166 = dma.hbm_to_vmem [thread:$0]  %s159, 4096, %s161, %s149, 128, 128, 8
        $region28: #{tpu_custom_call.1} parent=23 // pred_fallthru
          _
      $region24: #{tpu_custom_call.1} parent=5 // pred_fallthru
        _
      %p167 = scmp.le.s32.totalorder 1, %s16
      %p168 = scmp.lt.s32.totalorder %s16, 3
      %p169 = pnand %p167, %p168
      %p170 = pneg %p169
      // Predicated region
      $region29: #{tpu_custom_call.1} parent=5 // pred_check
        _
      $region30: #{tpu_custom_call.1} parent=5 // pred_check_branch
        %172 = sbr.rel (%p169) target = $region32
      $region31: #{tpu_custom_call.1} parent=5 // pred_region
        %s173 = ssub.s32 %s16, 1
        %s174 = sand.u32 %s29, 1
        %s175 = scalar_lea.sflag [#allocation3], %s174
        %s176 = sand.u32 %s29, 1
        %s177 = smul.addr %s176, 256
        %s178 = scalar_lea.vmem [#allocation2], %s177
        // Predicated region
        $region33: #{tpu_custom_call.1} parent=31 // pred_check
          %p179 = pneg %p42
        $region34: #{tpu_custom_call.1} parent=31 // pred_check_branch
          %181 = sbr.rel (%p179) target = $region36
        $region35: #{tpu_custom_call.1} parent=31 // pred_region
          %182 = dma.done %s175, 4096
        $region36: #{tpu_custom_call.1} parent=31 // pred_fallthru
          _
        // Predicated region
        $region37: #{tpu_custom_call.1} parent=31 // pred_check
          %p183 = pneg %p63
        $region38: #{tpu_custom_call.1} parent=31 // pred_check_branch
          %185 = sbr.rel (%p183) target = $region40
        $region39: #{tpu_custom_call.1} parent=31 // pred_region
          %186 = dma.done [#allocation6], 512
        $region40: #{tpu_custom_call.1} parent=31 // pred_fallthru
          _
        %s187 = sand.u32 %s29, 1
        %s188 = scalar_lea.sflag [#allocation3], %s187
        %s189 = sand.u32 %s29, 1
        %s190 = smul.addr %s189, 256
        %s191 = scalar_lea.vmem [#allocation2], %s190
        %p192 = pneg %p42
        %p193 = pneg %p39
        %p194 = pneg %p63
        %p195 = pneg %p60
        %p196 = pneg %p84
        %p197 = pneg %p81
        %p198 = pneg %p110
        %p199 = pneg %p107
        %s200 = sand.u32 %s97, 1
        %s201 = scalar_lea.sflag [#allocation4], %s200
        %s202 = sand.u32 %s97, 1
        %s203 = smul.addr %s202, 8
        %s204 = scalar_lea.vmem [#allocation7], %s203
        %s205 = smul.u32 8, %s21
        %v206 = vld [vmem:[%s178] sm:$0xff]
        %v207 = vld [vmem:[%s178 + $0x8] sm:$0xff]
        %v208 = vld [vmem:[%s178 + $0x10] sm:$0xff]
        %v209 = vld [vmem:[%s178 + $0x18] sm:$0xff]
        %v210 = vld [vmem:[%s178 + $0x20] sm:$0xff]
        %v211 = vld [vmem:[%s178 + $0x28] sm:$0xff]
        %v212 = vld [vmem:[%s178 + $0x30] sm:$0xff]
        %v213 = vld [vmem:[%s178 + $0x38] sm:$0xff]
        %v214 = vld [vmem:[%s178 + $0x40] sm:$0xff]
        %v215 = vld [vmem:[%s178 + $0x48] sm:$0xff]
        %v216 = vld [vmem:[%s178 + $0x50] sm:$0xff]
        %v217 = vld [vmem:[%s178 + $0x58] sm:$0xff]
        %v218 = vld [vmem:[%s178 + $0x60] sm:$0xff]
        %v219 = vld [vmem:[%s178 + $0x68] sm:$0xff]
        %v220 = vld [vmem:[%s178 + $0x70] sm:$0xff]
        %v221 = vld [vmem:[%s178 + $0x78] sm:$0xff]
        %v222 = vld [vmem:[%s178 + $0x80] sm:$0xff]
        %v223 = vld [vmem:[%s178 + $0x88] sm:$0xff]
        %v224 = vld [vmem:[%s178 + $0x90] sm:$0xff]
        %v225 = vld [vmem:[%s178 + $0x98] sm:$0xff]
        %v226 = vld [vmem:[%s178 + $0xa0] sm:$0xff]
        %v227 = vld [vmem:[%s178 + $0xa8] sm:$0xff]
        %v228 = vld [vmem:[%s178 + $0xb0] sm:$0xff]
        %v229 = vld [vmem:[%s178 + $0xb8] sm:$0xff]
        %v230 = vld [vmem:[%s178 + $0xc0] sm:$0xff]
        %v231 = vld [vmem:[%s178 + $0xc8] sm:$0xff]
        %v232 = vld [vmem:[%s178 + $0xd0] sm:$0xff]
        %v233 = vld [vmem:[%s178 + $0xd8] sm:$0xff]
        %v234 = vld [vmem:[%s178 + $0xe0] sm:$0xff]
        %v235 = vld [vmem:[%s178 + $0xe8] sm:$0xff]
        %v236 = vld [vmem:[%s178 + $0xf0] sm:$0xff]
        %v237 = vld [vmem:[%s178 + $0xf8] sm:$0xff]
        %vm238 = vcmask 523264
        %v239 = vsel %vm238, %v206, 0.0
        %240 = vadd.xlane.f32.xlu0 %v239
        %v241 = vpop.xlane.xlu0 %240
        %v242 = vsel %vm238, %v207, 0.0
        %243 = vadd.xlane.f32.xlu0 %v242
        %v244 = vpop.xlane.xlu0 %243
        %v245 = vsel %vm238, %v208, 0.0
        %246 = vadd.xlane.f32.xlu0 %v245
        %v247 = vpop.xlane.xlu0 %246
        %v248 = vsel %vm238, %v209, 0.0
        %249 = vadd.xlane.f32.xlu0 %v248
        %v250 = vpop.xlane.xlu0 %249
        %v251 = vsel %vm238, %v210, 0.0
        %252 = vadd.xlane.f32.xlu0 %v251
        %v253 = vpop.xlane.xlu0 %252
        %v254 = vsel %vm238, %v211, 0.0
        %255 = vadd.xlane.f32.xlu0 %v254
        %v256 = vpop.xlane.xlu0 %255
        %v257 = vsel %vm238, %v212, 0.0
        %258 = vadd.xlane.f32.xlu0 %v257
        %v259 = vpop.xlane.xlu0 %258
        %v260 = vsel %vm238, %v213, 0.0
        %261 = vadd.xlane.f32.xlu0 %v260
        %v262 = vpop.xlane.xlu0 %261
        %v263 = vsel %vm238, %v214, 0.0
        %264 = vadd.xlane.f32.xlu0 %v263
        %v265 = vpop.xlane.xlu0 %264
        %v266 = vsel %vm238, %v215, 0.0
        %267 = vadd.xlane.f32.xlu0 %v266
        %v268 = vpop.xlane.xlu0 %267
        %v269 = vsel %vm238, %v216, 0.0
        %270 = vadd.xlane.f32.xlu0 %v269
        %v271 = vpop.xlane.xlu0 %270
        %v272 = vsel %vm238, %v217, 0.0
        %273 = vadd.xlane.f32.xlu0 %v272
        %v274 = vpop.xlane.xlu0 %273
        %v275 = vsel %vm238, %v218, 0.0
        %276 = vadd.xlane.f32.xlu0 %v275
        %v277 = vpop.xlane.xlu0 %276
        %v278 = vsel %vm238, %v219, 0.0
        %279 = vadd.xlane.f32.xlu0 %v278
        %v280 = vpop.xlane.xlu0 %279
        %v281 = vsel %vm238, %v220, 0.0
        %282 = vadd.xlane.f32.xlu0 %v281
        %v283 = vpop.xlane.xlu0 %282
        %v284 = vsel %vm238, %v221, 0.0
        %285 = vadd.xlane.f32.xlu0 %v284
        %v286 = vpop.xlane.xlu0 %285
        %v287 = vsel %vm238, %v222, 0.0
        %288 = vadd.xlane.f32.xlu0 %v287
        %v289 = vpop.xlane.xlu0 %288
        %v290 = vsel %vm238, %v223, 0.0
        %291 = vadd.xlane.f32.xlu0 %v290
        %v292 = vpop.xlane.xlu0 %291
        %v293 = vsel %vm238, %v224, 0.0
        %294 = vadd.xlane.f32.xlu0 %v293
        %v295 = vpop.xlane.xlu0 %294
        %v296 = vsel %vm238, %v225, 0.0
        %297 = vadd.xlane.f32.xlu0 %v296
        %v298 = vpop.xlane.xlu0 %297
        %v299 = vsel %vm238, %v226, 0.0
        %300 = vadd.xlane.f32.xlu0 %v299
        %v301 = vpop.xlane.xlu0 %300
        %v302 = vsel %vm238, %v227, 0.0
        %303 = vadd.xlane.f32.xlu0 %v302
        %v304 = vpop.xlane.xlu0 %303
        %v305 = vsel %vm238, %v228, 0.0
        %306 = vadd.xlane.f32.xlu0 %v305
        %v307 = vpop.xlane.xlu0 %306
        %v308 = vsel %vm238, %v229, 0.0
        %309 = vadd.xlane.f32.xlu0 %v308
        %v310 = vpop.xlane.xlu0 %309
        %v311 = vsel %vm238, %v230, 0.0
        %312 = vadd.xlane.f32.xlu0 %v311
        %v313 = vpop.xlane.xlu0 %312
        %v314 = vsel %vm238, %v231, 0.0
        %315 = vadd.xlane.f32.xlu0 %v314
        %v316 = vpop.xlane.xlu0 %315
        %v317 = vsel %vm238, %v232, 0.0
        %318 = vadd.xlane.f32.xlu0 %v317
        %v319 = vpop.xlane.xlu0 %318
        %v320 = vsel %vm238, %v233, 0.0
        %321 = vadd.xlane.f32.xlu0 %v320
        %v322 = vpop.xlane.xlu0 %321
        %v323 = vsel %vm238, %v234, 0.0
        %324 = vadd.xlane.f32.xlu0 %v323
        %v325 = vpop.xlane.xlu0 %324
        %v326 = vsel %vm238, %v235, 0.0
        %327 = vadd.xlane.f32.xlu0 %v326
        %v328 = vpop.xlane.xlu0 %327
        %v329 = vsel %vm238, %v236, 0.0
        %330 = vadd.xlane.f32.xlu0 %v329
        %v331 = vpop.xlane.xlu0 %330
        %v332 = vsel %vm238, %v237, 0.0
        %333 = vadd.xlane.f32.xlu0 %v332
        %v334 = vpop.xlane.xlu0 %333
        %v335 = vld [vmem:[#allocation5] sm:$0xff]
        %v336 = vld [vmem:[#allocation5 + $0x8] sm:$0xff]
        %v337 = vld [vmem:[#allocation5 + $0x10] sm:$0xff]
        %v338 = vld [vmem:[#allocation5 + $0x18] sm:$0xff]
        %v339 = vld [vmem:[%s2] sm:$0x1]
        %v341 = vlaneseq
        %v342 = vshrl.u32 %v341, 7
        %v343 = vsub.s32 0, %v342
        %v344 = vrot.slane %v339, %v343
        %v378 = vlaneseq
        %v379 = vand.u32 %v378, 127
        %v380 = vlaneseq
        %v381 = vshrl.u32 %v380, 7
        %v382 = vsub.s32 %v379, %v381
        %v383 = vrot.slane %v241, %v382
        %v384 = vadd.s32 %v379, 4294967288
        %v385 = vlaneseq
        %v386 = vshrl.u32 %v385, 7
        %v387 = vsub.s32 %v384, %v386
        %v388 = vrot.slane %v244, %v387
        %vm389 = vcmask 130112
        %v390 = vsel %vm389, %v388, %v383
        %v391 = vadd.s32 %v379, 4294967280
        %v392 = vlaneseq
        %v393 = vshrl.u32 %v392, 7
        %v394 = vsub.s32 %v391, %v393
        %v395 = vrot.slane %v247, %v394
        %vm396 = vcmask 195712
        %v397 = vsel %vm396, %v395, %v390
        %v398 = vadd.s32 %v379, 4294967272
        %v399 = vlaneseq
        %v400 = vshrl.u32 %v399, 7
        %v401 = vsub.s32 %v398, %v400
        %v402 = vrot.slane %v250, %v401
        %vm403 = vcmask 261312
        %v404 = vsel %vm403, %v402, %v397
        %v405 = vlaneseq
        %v406 = vshrl.u32 %v405, 7
        %v407 = vsub.s32 %v379, %v406
        %v408 = vrot.slane %v253, %v407
        %v409 = vlaneseq
        %v410 = vshrl.u32 %v409, 7
        %v411 = vsub.s32 %v384, %v410
        %v412 = vrot.slane %v256, %v411
        %v413 = vsel %vm389, %v412, %v408
        %v414 = vlaneseq
        %v415 = vshrl.u32 %v414, 7
        %v416 = vsub.s32 %v391, %v415
        %v417 = vrot.slane %v259, %v416
        %v418 = vsel %vm396, %v417, %v413
        %v419 = vlaneseq
        %v420 = vshrl.u32 %v419, 7
        %v421 = vsub.s32 %v398, %v420
        %v422 = vrot.slane %v262, %v421
        %v423 = vsel %vm403, %v422, %v418
        %v424 = vlaneseq
        %v425 = vshrl.u32 %v424, 7
        %v426 = vsub.s32 %v379, %v425
        %v427 = vrot.slane %v265, %v426
        %v428 = vlaneseq
        %v429 = vshrl.u32 %v428, 7
        %v430 = vsub.s32 %v384, %v429
        %v431 = vrot.slane %v268, %v430
        %v432 = vsel %vm389, %v431, %v427
        %v433 = vlaneseq
        %v434 = vshrl.u32 %v433, 7
        %v435 = vsub.s32 %v391, %v434
        %v436 = vrot.slane %v271, %v435
        %v437 = vsel %vm396, %v436, %v432
        %v438 = vlaneseq
        %v439 = vshrl.u32 %v438, 7
        %v440 = vsub.s32 %v398, %v439
        %v441 = vrot.slane %v274, %v440
        %v442 = vsel %vm403, %v441, %v437
        %v443 = vlaneseq
        %v444 = vshrl.u32 %v443, 7
        %v445 = vsub.s32 %v379, %v444
        %v446 = vrot.slane %v277, %v445
        %v447 = vlaneseq
        %v448 = vshrl.u32 %v447, 7
        %v449 = vsub.s32 %v384, %v448
        %v450 = vrot.slane %v280, %v449
        %v451 = vsel %vm389, %v450, %v446
        %v452 = vlaneseq
        %v453 = vshrl.u32 %v452, 7
        %v454 = vsub.s32 %v391, %v453
        %v455 = vrot.slane %v283, %v454
        %v456 = vsel %vm396, %v455, %v451
        %v457 = vlaneseq
        %v458 = vshrl.u32 %v457, 7
        %v459 = vsub.s32 %v398, %v458
        %v460 = vrot.slane %v286, %v459
        %v461 = vsel %vm403, %v460, %v456
        %v462 = vlaneseq
        %v463 = vshrl.u32 %v462, 7
        %v464 = vsub.s32 %v379, %v463
        %v465 = vrot.slane %v289, %v464
        %v466 = vlaneseq
        %v467 = vshrl.u32 %v466, 7
        %v468 = vsub.s32 %v384, %v467
        %v469 = vrot.slane %v292, %v468
        %v470 = vsel %vm389, %v469, %v465
        %v471 = vlaneseq
        %v472 = vshrl.u32 %v471, 7
        %v473 = vsub.s32 %v391, %v472
        %v474 = vrot.slane %v295, %v473
        %v475 = vsel %vm396, %v474, %v470
        %v476 = vlaneseq
        %v477 = vshrl.u32 %v476, 7
        %v478 = vsub.s32 %v398, %v477
        %v479 = vrot.slane %v298, %v478
        %v480 = vsel %vm403, %v479, %v475
        %v481 = vlaneseq
        %v482 = vshrl.u32 %v481, 7
        %v483 = vsub.s32 %v379, %v482
        %v484 = vrot.slane %v301, %v483
        %v485 = vlaneseq
        %v486 = vshrl.u32 %v485, 7
        %v487 = vsub.s32 %v384, %v486
        %v488 = vrot.slane %v304, %v487
        %v489 = vsel %vm389, %v488, %v484
        %v490 = vlaneseq
        %v491 = vshrl.u32 %v490, 7
        %v492 = vsub.s32 %v391, %v491
        %v493 = vrot.slane %v307, %v492
        %v494 = vsel %vm396, %v493, %v489
        %v495 = vlaneseq
        %v496 = vshrl.u32 %v495, 7
        %v497 = vsub.s32 %v398, %v496
        %v498 = vrot.slane %v310, %v497
        %v499 = vsel %vm403, %v498, %v494
        %v500 = vlaneseq
        %v501 = vshrl.u32 %v500, 7
        %v502 = vsub.s32 %v379, %v501
        %v503 = vrot.slane %v313, %v502
        %v504 = vlaneseq
        %v505 = vshrl.u32 %v504, 7
        %v506 = vsub.s32 %v384, %v505
        %v507 = vrot.slane %v316, %v506
        %v508 = vsel %vm389, %v507, %v503
        %v509 = vlaneseq
        %v510 = vshrl.u32 %v509, 7
        %v511 = vsub.s32 %v391, %v510
        %v512 = vrot.slane %v319, %v511
        %v513 = vsel %vm396, %v512, %v508
        %v514 = vlaneseq
        %v515 = vshrl.u32 %v514, 7
        %v516 = vsub.s32 %v398, %v515
        %v517 = vrot.slane %v322, %v516
        %v518 = vsel %vm403, %v517, %v513
        %v519 = vlaneseq
        %v520 = vshrl.u32 %v519, 7
        %v521 = vsub.s32 %v379, %v520
        %v522 = vrot.slane %v325, %v521
        %v523 = vlaneseq
        %v524 = vshrl.u32 %v523, 7
        %v525 = vsub.s32 %v384, %v524
        %v526 = vrot.slane %v328, %v525
        %v527 = vsel %vm389, %v526, %v522
        %v528 = vlaneseq
        %v529 = vshrl.u32 %v528, 7
        %v530 = vsub.s32 %v391, %v529
        %v531 = vrot.slane %v331, %v530
        %v532 = vsel %vm396, %v531, %v527
        %v533 = vlaneseq
        %v534 = vshrl.u32 %v533, 7
        %v535 = vsub.s32 %v398, %v534
        %v536 = vrot.slane %v334, %v535
        %v537 = vsel %vm403, %v536, %v532
        %vm538 = vcmask 1041409
        %v539 = vsel %vm538, %v423, %v404
        %vm540 = vcmask 1042434
        %v541 = vsel %vm540, %v442, %v539
        %vm542 = vcmask 1043459
        %v543 = vsel %vm542, %v461, %v541
        %vm544 = vcmask 1044484
        %v545 = vsel %vm544, %v480, %v543
        %vm546 = vcmask 1045509
        %v547 = vsel %vm546, %v499, %v545
        %vm548 = vcmask 1046534
        %v549 = vsel %vm548, %v518, %v547
        %vm550 = vcmask 1047559
        %v551 = vsel %vm550, %v537, %v549
        %vm552 = vcmask 261120
        %v553 = vsel %vm552, %v551, 0
        %555 = vmatprep.subr.mxu0 0.0
        %556 = vmatpush1.msra.mxu0 %v335
        %557 = vmatprep.subr.mxu0 0.0
        %558 = vmatpush1.msra.mxu0 %v336
        %559 = vmatprep.subr.mxu0 0.0
        %560 = vmatpush1.msra.mxu0 %v337
        %561 = vmatprep.subr.mxu0 0.0
        %562 = vmatpush1.msra.mxu0 %v338
        %563 = vmatprep.subr.mxu0 0.0
        %564 = vmatpush1.msra.mxu0 0.0
        %565 = vmatprep.subr.mxu0 0.0
        %566 = vmatpush1.msra.mxu0 0.0
        %567 = vmatprep.subr.mxu0 0.0
        %568 = vmatpush1.msra.mxu0 0.0
        %569 = vmatprep.subr.mxu0 0.0
        %570 = vmatpush1.msra.mxu0 0.0
        %571 = vmatprep.subr.mxu0 0.0
        %572 = vmatpush1.msra.mxu0 0.0
        %573 = vmatprep.subr.mxu0 0.0
        %574 = vmatpush1.msra.mxu0 0.0
        %575 = vmatprep.subr.mxu0 0.0
        %576 = vmatpush1.msra.mxu0 0.0
        %577 = vmatprep.subr.mxu0 0.0
        %578 = vmatpush1.msra.mxu0 0.0
        %579 = vmatprep.subr.mxu0 0.0
        %580 = vmatpush1.msra.mxu0 0.0
        %581 = vmatprep.subr.mxu0 0.0
        %582 = vmatpush1.msra.mxu0 0.0
        %583 = vmatprep.subr.mxu0 0.0
        %584 = vmatpush1.msra.mxu0 0.0
        %585 = vmatprep.subr.mxu0 0.0
        %586 = vmatpush1.msra.mxu0 0.0
        %587 = vmatprep.subr.mxu0 0.0
        %588 = vmatpush1.msra.mxu0 0.0
        %589 = vmatprep.subr.mxu0 0.0
        %590 = vmatpush1.msra.mxu0 0.0
        %591 = vmatprep.subr.mxu0 0.0
        %592 = vmatpush1.msra.mxu0 0.0
        %593 = vmatprep.subr.mxu0 0.0
        %594 = vmatpush1.msra.mxu0 0.0
        %595 = vmatprep.subr.mxu0 0.0
        %596 = vmatpush1.msra.mxu0 0.0
        %597 = vmatprep.subr.mxu0 0.0
        %598 = vmatpush1.msra.mxu0 0.0
        %599 = vmatprep.subr.mxu0 0.0
        %600 = vmatpush1.msra.mxu0 0.0
        %601 = vmatprep.subr.mxu0 0.0
        %602 = vmatpush1.msra.mxu0 0.0
        %603 = vmatprep.subr.mxu0 0.0
        %604 = vmatpush1.msra.mxu0 0.0
        %605 = vmatprep.subr.mxu0 0.0
        %606 = vmatpush1.msra.mxu0 0.0
        %607 = vmatprep.subr.mxu0 0.0
        %608 = vmatpush1.msra.mxu0 0.0
        %609 = vmatprep.subr.mxu0 0.0
        %610 = vmatpush1.msra.mxu0 0.0
        %611 = vmatprep.subr.mxu0 0.0
        %612 = vmatpush1.msra.mxu0 0.0
        %613 = vmatprep.subr.mxu0 0.0
        %614 = vmatpush1.msra.mxu0 0.0
        %615 = vmatprep.subr.mxu0 0.0
        %616 = vmatpush1.msra.mxu0 0.0
        %617 = vmatprep.subr.mxu0 0.0
        %618 = vmatpush1.msra.mxu0 0.0
        %619 = vmatprep.mubr.f32.mxu0 0.0
        %620 = vmatmul.mubr.f32.gmra.mrb[0].mxu0 %v553
        %v621 = vpop.f32.mrb[0].mxu0
        %v622 = vadd.f32 %v344, %v621
        %v623 = vpop.f32.mrb[0].mxu0
        %624 = vdwg.mxu0
        %625 = vst [vmem:[%s204] sm:$0xff] %v622
        %s626 = sand.u32 %s97, 1
        %s627 = scalar_lea.sflag [#allocation4], %s626
        %s628 = sand.u32 %s97, 1
        %s629 = smul.addr %s628, 8
        %s630 = scalar_lea.vmem [#allocation7], %s629
        // Predicated region
        $region41: #{tpu_custom_call.1} parent=31 // pred_check
          %p631 = pneg %p107
        $region42: #{tpu_custom_call.1} parent=31 // pred_check_branch
          %633 = sbr.rel (%p631) target = $region44
        $region43: #{tpu_custom_call.1} parent=31 // pred_region
          %s635 = ssub.s32 128, 128
          %636 = vsyncadd %s627, %s635
          %s637 = smul.addr %s21, 128
          %s638 = scalar_lea.hbm %s3, %s637
          %s640 = sshll.u32 %s630, 4
          %s641 = int_to_ptr.vmem [resolvable:$true] %s640
          %643 = dma.vmem_to_hbm [thread:$0]  %s641, 128, %s638, %s627
        $region44: #{tpu_custom_call.1} parent=31 // pred_fallthru
          _
      $region32: #{tpu_custom_call.1} parent=5 // pred_fallthru
        _
      %p644 = scmp.le.s32.totalorder 2, %s16
      // Predicated region
      $region45: #{tpu_custom_call.1} parent=5 // pred_check
        %p645 = pneg %p644
      $region46: #{tpu_custom_call.1} parent=5 // pred_check_branch
        %647 = sbr.rel (%p645) target = $region48
      $region47: #{tpu_custom_call.1} parent=5 // pred_region
        %s648 = ssub.s32 %s16, 2
        // Predicated region
        $region49: #{tpu_custom_call.1} parent=47 // pred_check
          %p649 = pneg %p113
        $region50: #{tpu_custom_call.1} parent=47 // pred_check_branch
          %651 = sbr.rel (%p649) target = $region52
        $region51: #{tpu_custom_call.1} parent=47 // pred_region
          %s652 = sand.u32 %s98, 1
          %s653 = scalar_lea.sflag [#allocation4], %s652
          %s654 = sand.u32 %s98, 1
          %s655 = smul.addr %s654, 8
          %s656 = scalar_lea.vmem [#allocation7], %s655
          %657 = dma.done %s653, 128
        $region52: #{tpu_custom_call.1} parent=47 // pred_fallthru
          _
      $region48: #{tpu_custom_call.1} parent=5 // pred_fallthru
        _
    $region6: #{tpu_custom_call.1} parent=1 // loop_footer
      %s20 = sadd.s32 1, %s16
    $region7: #{tpu_custom_call.1} parent=1 // loop_footer_branch
      %15 = sbr.rel target = $region3
    $region8: #{tpu_custom_call.1} parent=1 // loop_exit
      _
    %658 = vsyncpa [#allocation3], 1
    %s659 = scalar_lea.sflag [#allocation3], 1
    %660 = vsyncpa %s659, 1
    %661 = vsyncpa [#allocation6], 1
    %662 = vsyncpa [#allocation4], 1
    %s663 = scalar_lea.sflag [#allocation4], 1
    %664 = vsyncpa %s663, 1

</llo_original>
